<compile_context>
chip_gen: v7x
topology: tpu7x:2x2x1
jax: 0.10.0
libtpu: 0.0.40
codegen_flags: <defaults>
</compile_context>

<pallas_src>
import functools

import jax
import jax.numpy as jnp
from jax import lax
from jax.experimental import pallas as pl
from jax.experimental.pallas import tpu as pltpu

LANE = 128             # lane tile (last dim)
MAX_BLOCK_ROWS = 1024  # rows per grid step (1024*128*4B = 512 KiB per input)


def _pr_kernel(pre_ref, lab_ref, sums_ref, acc_c, acc_p, acc_l,
               *, threshold, valid_rows, block_rows):
    step = pl.program_id(0)
    last = pl.num_programs(0) - 1

    @pl.when(step == 0)
    def _():
        acc_c[...] = jnp.zeros_like(acc_c)
        acc_p[...] = jnp.zeros_like(acc_p)
        acc_l[...] = jnp.zeros_like(acc_l)

    # Row-validity mask: only the last grid block can be ragged; rows past
    # `valid_rows` hold unspecified VMEM contents and must not contribute.
    row = lax.broadcasted_iota(jnp.int32, (block_rows, LANE), 0)
    valid = (step * block_rows + row) < valid_rows

    pre = pre_ref[...]
    lab = lab_ref[...]

    # pred = 1[pre > threshold]; labels are {0,1} so correct = pred * label.
    pred = jnp.where(valid & (pre > threshold), 1.0, 0.0)
    lab_f = jnp.where(valid, lab, 0).astype(jnp.float32)
    correct = pred * lab_f

    acc_c[...] += correct   # correct_positive partials (per lane/sublane)
    acc_p[...] += pred      # pre_results partials
    acc_l[...] += lab_f     # label partials

    @pl.when(step == last)
    def _():
        sums_ref[0] = jnp.sum(acc_c[...])
        sums_ref[1] = jnp.sum(acc_p[...])
        sums_ref[2] = jnp.sum(acc_l[...])


def pr_metric(pre, label, threshold=0.5):
    """Pallas implementation of PRMetric.forward -> (precision, recall)."""
    if pre.shape != label.shape:          # torch's squeeze-on-mismatch behaviour
        pre = jnp.squeeze(pre)
    assert pre.shape == label.shape

    n = pre.size
    pre_flat = jnp.ravel(pre)
    lab_flat = jnp.ravel(label)

    # Pad (only if needed) to a multiple of 8*128 elements.  Pad values are
    # chosen to contribute nothing: pre = -inf -> pred = 0, label = 0.
    chunk = 8 * LANE
    n_pad = ((n + chunk - 1) // chunk) * chunk
    if n_pad != n:
        pad = n_pad - n
        pre_flat = jnp.pad(pre_flat, (0, pad), constant_values=-jnp.inf)
        lab_flat = jnp.pad(lab_flat, (0, pad))

    rows = n_pad // LANE
    block_rows = min(MAX_BLOCK_ROWS, rows)   # both are multiples of 8
    grid = (pl.cdiv(rows, block_rows),)

    pre2 = pre_flat.reshape(rows, LANE)
    lab2 = lab_flat.reshape(rows, LANE)

    kernel = functools.partial(
        _pr_kernel, threshold=float(threshold),
        valid_rows=rows, block_rows=block_rows)

    sums = pl.pallas_call(
        kernel,
        out_shape=jax.ShapeDtypeStruct((3,), jnp.float32),
        grid=grid,
        in_specs=[
            pl.BlockSpec((block_rows, LANE), lambda i: (i, 0)),
            pl.BlockSpec((block_rows, LANE), lambda i: (i, 0)),
        ],
        out_specs=pl.BlockSpec(memory_space=pltpu.MemorySpace.SMEM),
        scratch_shapes=[pltpu.VMEM((block_rows, LANE), jnp.float32)] * 3,
        compiler_params=pltpu.CompilerParams(
            dimension_semantics=("arbitrary",)),
    )(pre2, lab2)

    p = sums[0] / sums[1]
    r = sums[0] / sums[2]
    return p, r


def _pr_metric_ref(pre, label, threshold=0.5):
    if pre.shape != label.shape:
        pre = jnp.squeeze(pre)
    pred = jnp.where(pre > threshold, 1.0, 0.0).astype(jnp.float32)
    lab = label.astype(jnp.float32)
    correct = ((pred == lab) & (lab == 1.0)).astype(jnp.float32)
    p = correct.sum() / pred.sum()
    r = correct.sum() / lab.sum()
    return p, r


if __name__ == "__main__":
    key = jax.random.PRNGKey(0)
    k1, k2, k3, k4 = jax.random.split(key, 4)

    # Case 1: small NCHW input matching the module's typical use; `pre` carries
    # a trailing singleton dim to exercise the squeeze branch.
    B, C, H, W = 2, 4, 16, 16
    pre = jax.random.uniform(k1, (B, C, H, W, 1), dtype=jnp.float32)
    label = jax.random.bernoulli(k2, p=0.5, shape=(B, C, H, W)).astype(jnp.int32)

    p, r = pr_metric(pre, label, threshold=0.5)
    p = jax.block_until_ready(p)
    r = jax.block_until_ready(r)
    p_ref, r_ref = _pr_metric_ref(pre, label, threshold=0.5)
    assert jnp.allclose(p, p_ref, rtol=1e-6, atol=1e-6), (p, p_ref)
    assert jnp.allclose(r, r_ref, rtol=1e-6, atol=1e-6), (r, r_ref)

    # Case 2: odd-sized input -> exercises wrapper padding, a multi-step grid
    # and the ragged-last-block mask.
    pre2 = jax.random.uniform(k3, (1, 3, 223, 223), dtype=jnp.float32)
    label2 = jax.random.bernoulli(k4, p=0.3, shape=(1, 3, 223, 223)).astype(jnp.int32)
    p2, r2 = pr_metric(pre2, label2, threshold=0.3)
    p2 = jax.block_until_ready(p2)
    r2 = jax.block_until_ready(r2)
    p2_ref, r2_ref = _pr_metric_ref(pre2, label2, threshold=0.3)
    assert jnp.allclose(p2, p2_ref, rtol=1e-6, atol=1e-6), (p2, p2_ref)
    assert jnp.allclose(r2, r2_ref, rtol=1e-6, atol=1e-6), (r2, r2_ref)

    print("KERNEL_OK")
</pallas_src>

<mosaic_0001>
module attributes {stable_mosaic.version = 11 : i64} {
  func.func @_pr_kernel(%arg0: i32, %arg1: memref<16x128xf32, #tpu.memory_space<vmem>>, %arg2: memref<16x128xi32, #tpu.memory_space<vmem>>, %arg3: memref<3xf32, #tpu.memory_space<smem>>, %arg4: memref<16x128xf32, #tpu.memory_space<vmem>>, %arg5: memref<16x128xf32, #tpu.memory_space<vmem>>, %arg6: memref<16x128xf32, #tpu.memory_space<vmem>>) attributes {dimension_semantics = [#tpu.dimension_semantics<arbitrary>], iteration_bounds = array<i64: 1>, scalar_prefetch = 0 : i64, scratch_operands = 3 : i64, tpu.core_type = #tpu.core_type<tc>, window_params = [{transform_indices = @transform_0, window_bounds = array<i64: 16, 128>}, {transform_indices = @transform_1, window_bounds = array<i64: 16, 128>}, {transform_indices = @transform_2, window_bounds = array<i64: 3>}]} {
    %c0_i32 = arith.constant 0 : i32
    %0 = arith.cmpi eq, %arg0, %c0_i32 : i32
    %1 = arith.extui %0 : i1 to i32
    %c0_i32_0 = arith.constant 0 : i32
    %2 = arith.cmpi ne, %1, %c0_i32_0 : i32
    scf.if %2 {
      %cst_22 = arith.constant 0.000000e+00 : f32
      %33 = vector.broadcast %cst_22 : f32 to vector<16x128xf32>
      %c0_23 = arith.constant 0 : index
      %c0_24 = arith.constant 0 : index
      %34 = vector.load %arg4[%c0_23, %c0_24] : memref<16x128xf32, #tpu.memory_space<vmem>>, vector<16x128xf32>
      tpu.vector_store %arg4[%c0_23, %c0_24], %33 {strides = array<i32>} : memref<16x128xf32, #tpu.memory_space<vmem>>, vector<16x128xf32>,
      %cst_25 = arith.constant 0.000000e+00 : f32
      %35 = vector.broadcast %cst_25 : f32 to vector<16x128xf32>
      %c0_26 = arith.constant 0 : index
      %c0_27 = arith.constant 0 : index
      %36 = vector.load %arg5[%c0_26, %c0_27] : memref<16x128xf32, #tpu.memory_space<vmem>>, vector<16x128xf32>
      tpu.vector_store %arg5[%c0_26, %c0_27], %35 {strides = array<i32>} : memref<16x128xf32, #tpu.memory_space<vmem>>, vector<16x128xf32>,
      %cst_28 = arith.constant 0.000000e+00 : f32
      %37 = vector.broadcast %cst_28 : f32 to vector<16x128xf32>
      %c0_29 = arith.constant 0 : index
      %c0_30 = arith.constant 0 : index
      %38 = vector.load %arg6[%c0_29, %c0_30] : memref<16x128xf32, #tpu.memory_space<vmem>>, vector<16x128xf32>
      tpu.vector_store %arg6[%c0_29, %c0_30], %37 {strides = array<i32>} : memref<16x128xf32, #tpu.memory_space<vmem>>, vector<16x128xf32>,
    } else {
    }
    %3 = tpu.iota {dimensions = array<i32: 0>} : vector<16x128xi32>
    %c16_i32 = arith.constant 16 : i32
    %4 = arith.muli %arg0, %c16_i32 : i32
    %5 = vector.broadcast %4 : i32 to vector<16x128xi32>
    %6 = arith.addi %5, %3 : vector<16x128xi32>
    %c16_i32_1 = arith.constant 16 : i32
    %7 = vector.broadcast %c16_i32_1 : i32 to vector<16x128xi32>
    %8 = arith.cmpi slt, %6, %7 : vector<16x128xi32>
    %c0 = arith.constant 0 : index
    %c0_2 = arith.constant 0 : index
    %9 = vector.load %arg1[%c0, %c0_2] : memref<16x128xf32, #tpu.memory_space<vmem>>, vector<16x128xf32>
    %c0_3 = arith.constant 0 : index
    %c0_4 = arith.constant 0 : index
    %10 = vector.load %arg2[%c0_3, %c0_4] : memref<16x128xi32, #tpu.memory_space<vmem>>, vector<16x128xi32>
    %cst = arith.constant 5.000000e-01 : f32
    %11 = vector.broadcast %cst : f32 to vector<16x128xf32>
    %12 = arith.cmpf ogt, %9, %11 : vector<16x128xf32>
    %13 = arith.andi %8, %12 : vector<16x128xi1>
    %cst_5 = arith.constant 1.000000e+00 : f32
    %cst_6 = arith.constant 0.000000e+00 : f32
    %14 = vector.broadcast %cst_5 : f32 to vector<16x128xf32>
    %15 = vector.broadcast %cst_6 : f32 to vector<16x128xf32>
    %16 = arith.select %13, %14, %15 : vector<16x128xi1>, vector<16x128xf32>
    %c0_i32_7 = arith.constant 0 : i32
    %17 = vector.broadcast %c0_i32_7 : i32 to vector<16x128xi32>
    %18 = arith.select %8, %10, %17 : vector<16x128xi1>, vector<16x128xi32>
    %19 = arith.sitofp %18 : vector<16x128xi32> to vector<16x128xf32>
    %20 = arith.mulf %16, %19 : vector<16x128xf32>
    %c0_8 = arith.constant 0 : index
    %c0_9 = arith.constant 0 : index
    %21 = vector.load %arg4[%c0_8, %c0_9] : memref<16x128xf32, #tpu.memory_space<vmem>>, vector<16x128xf32>
    %22 = arith.addf %21, %20 : vector<16x128xf32>
    %c0_10 = arith.constant 0 : index
    %c0_11 = arith.constant 0 : index
    %23 = vector.load %arg4[%c0_10, %c0_11] : memref<16x128xf32, #tpu.memory_space<vmem>>, vector<16x128xf32>
    tpu.vector_store %arg4[%c0_10, %c0_11], %22 {strides = array<i32>} : memref<16x128xf32, #tpu.memory_space<vmem>>, vector<16x128xf32>,
    %c0_12 = arith.constant 0 : index
    %c0_13 = arith.constant 0 : index
    %24 = vector.load %arg5[%c0_12, %c0_13] : memref<16x128xf32, #tpu.memory_space<vmem>>, vector<16x128xf32>
    %25 = arith.addf %24, %16 : vector<16x128xf32>
    %c0_14 = arith.constant 0 : index
    %c0_15 = arith.constant 0 : index
    %26 = vector.load %arg5[%c0_14, %c0_15] : memref<16x128xf32, #tpu.memory_space<vmem>>, vector<16x128xf32>
    tpu.vector_store %arg5[%c0_14, %c0_15], %25 {strides = array<i32>} : memref<16x128xf32, #tpu.memory_space<vmem>>, vector<16x128xf32>,
    %c0_16 = arith.constant 0 : index
    %c0_17 = arith.constant 0 : index
    %27 = vector.load %arg6[%c0_16, %c0_17] : memref<16x128xf32, #tpu.memory_space<vmem>>, vector<16x128xf32>
    %28 = arith.addf %27, %19 : vector<16x128xf32>
    %c0_18 = arith.constant 0 : index
    %c0_19 = arith.constant 0 : index
    %29 = vector.load %arg6[%c0_18, %c0_19] : memref<16x128xf32, #tpu.memory_space<vmem>>, vector<16x128xf32>
    tpu.vector_store %arg6[%c0_18, %c0_19], %28 {strides = array<i32>} : memref<16x128xf32, #tpu.memory_space<vmem>>, vector<16x128xf32>,
    %c0_i32_20 = arith.constant 0 : i32
    %30 = arith.cmpi eq, %arg0, %c0_i32_20 : i32
    %31 = arith.extui %30 : i1 to i32
    %c0_i32_21 = arith.constant 0 : i32
    %32 = arith.cmpi ne, %31, %c0_i32_21 : i32
    scf.if %32 {
      %c0_22 = arith.constant 0 : index
      %c0_23 = arith.constant 0 : index
      %33 = vector.load %arg4[%c0_22, %c0_23] : memref<16x128xf32, #tpu.memory_space<vmem>>, vector<16x128xf32>
      %34 = vector.shape_cast %33 : vector<16x128xf32> to vector<1x16x128xf32>
      %cst_24 = arith.constant dense<0.000000e+00> : vector<1xf32>
      %35 = vector.multi_reduction <add>, %34, %cst_24 [1, 2] : vector<1x16x128xf32> to vector<1xf32>
      %36 = vector.shape_cast %35 : vector<1xf32> to vector<1x1x1xf32>
      %37 = vector.extract %36[0, 0, 0] : f32 from vector<1x1x1xf32>
      %c0_25 = arith.constant 0 : index
      %38 = memref.load %arg3[%c0_25] : memref<3xf32, #tpu.memory_space<smem>>
      memref.store %37, %arg3[%c0_25] : memref<3xf32, #tpu.memory_space<smem>>
      %c0_26 = arith.constant 0 : index
      %c0_27 = arith.constant 0 : index
      %39 = vector.load %arg5[%c0_26, %c0_27] : memref<16x128xf32, #tpu.memory_space<vmem>>, vector<16x128xf32>
      %40 = vector.shape_cast %39 : vector<16x128xf32> to vector<1x16x128xf32>
      %cst_28 = arith.constant dense<0.000000e+00> : vector<1xf32>
      %41 = vector.multi_reduction <add>, %40, %cst_28 [1, 2] : vector<1x16x128xf32> to vector<1xf32>
      %42 = vector.shape_cast %41 : vector<1xf32> to vector<1x1x1xf32>
      %43 = vector.extract %42[0, 0, 0] : f32 from vector<1x1x1xf32>
      %c1 = arith.constant 1 : index
      %44 = memref.load %arg3[%c1] : memref<3xf32, #tpu.memory_space<smem>>
      memref.store %43, %arg3[%c1] : memref<3xf32, #tpu.memory_space<smem>>
      %c0_29 = arith.constant 0 : index
      %c0_30 = arith.constant 0 : index
      %45 = vector.load %arg6[%c0_29, %c0_30] : memref<16x128xf32, #tpu.memory_space<vmem>>, vector<16x128xf32>
      %46 = vector.shape_cast %45 : vector<16x128xf32> to vector<1x16x128xf32>
      %cst_31 = arith.constant dense<0.000000e+00> : vector<1xf32>
      %47 = vector.multi_reduction <add>, %46, %cst_31 [1, 2] : vector<1x16x128xf32> to vector<1xf32>
      %48 = vector.shape_cast %47 : vector<1xf32> to vector<1x1x1xf32>
      %49 = vector.extract %48[0, 0, 0] : f32 from vector<1x1x1xf32>
      %c2 = arith.constant 2 : index
      %50 = memref.load %arg3[%c2] : memref<3xf32, #tpu.memory_space<smem>>
      memref.store %49, %arg3[%c2] : memref<3xf32, #tpu.memory_space<smem>>
    } else {
    }
    return
  }
  func.func @transform_0(%arg0: i32) -> (i32, i32) {
    %c0_i32 = arith.constant 0 : i32
    %c0_i32_0 = arith.constant 0 : i32
    return %arg0, %c0_i32 : i32, i32
  }
  func.func @transform_1(%arg0: i32) -> (i32, i32) {
    %c0_i32 = arith.constant 0 : i32
    %c0_i32_0 = arith.constant 0 : i32
    return %arg0, %c0_i32 : i32, i32
  }
  func.func @transform_2(%arg0: i32) -> i32 {
    %c0_i32 = arith.constant 0 : i32
    %c0_i32_0 = arith.constant 0 : i32
    return %c0_i32 : i32
  }
}

</mosaic_0001>

<llo_original>
// kernel: tpu_custom_call.1
$region0: #{tpu_custom_call.1}
  #allocation0 [shape = 'u32[]', space=smem, size = 0x4, offset = 0x4, fixed_abs, tag = 'smem constant byte address 0x4 - core index']
  #allocation1 [shape = 'u32[144,128]{1,0:T(1,128)}', space=vmem, size = 0x12000, scoped, tag = 'internal scratch']
  #allocation2 [shape = 'f32[16,128]{1,0:T(8,128)}', space=vmem, size = 0x2000, scoped, tag = 'scratch operand']
  #allocation3 [shape = 'f32[16,128]{1,0:T(8,128)}', space=vmem, size = 0x2000, scoped, tag = 'scratch operand']
  #allocation4 [shape = 'f32[16,128]{1,0:T(8,128)}', space=vmem, size = 0x2000, scoped, tag = 'scratch operand']
  %s0 = inlined_call_operand.hbm [shape: f32[16,128], index: 0, kind: input, shape index: {}]
  %s1 = inlined_call_operand.hbm [shape: s32[16,128], index: 1, kind: input, shape index: {}]
  %s2 = inlined_call_operand.hbm [shape: f32[3], index: 2, kind: output, shape index: {}]
  %s3 = sld [smem:[#allocation0]]
  $region34: #{tpu_custom_call.1} parent=0
    _
  %s5 = ssub.s32 1, %s3
  %s6 = scalar_select 0, %s5, %s3
  $region1: #{tpu_custom_call.1} parent=0
    #allocation5 [shape = 'u8[8192]{0}', space=vmem, size = 0x2000, scoped, tag = 'input window, operand 0, single buffered']
    #allocation6 [shape = 's32[1]{0}', space=sflag, size = 0x4, scoped, tag = 'scoped memory for tpu_custom_call.1']
    #allocation7 [shape = 's32[1]{0}', space=sflag, size = 0x4, scoped, tag = 'scoped memory for tpu_custom_call.1']
    #allocation8 [shape = 'u8[8192]{0}', space=vmem, size = 0x2000, scoped, tag = 'input window, operand 1, single buffered']
    #allocation9 [shape = 's32[1]{0}', space=sflag, size = 0x4, scoped, tag = 'scoped memory for tpu_custom_call.1']
    #allocation10 [shape = 'u8[512]{0}', space=smem, size = 0x200, scoped, tag = 'output window, operand 0, single buffered']
    %7 = vsyncpa [#allocation6], 0
    %8 = vsyncpa [#allocation9], 0
    %9 = vsyncpa [#allocation7], 0
    // Predicated region
    $region2: #{tpu_custom_call.1} parent=1 // pred_check
      _
    $region3: #{tpu_custom_call.1} parent=1 // pred_check_branch
      %11 = sbr.rel (0) target = $region5
    $region4: #{tpu_custom_call.1} parent=1 // pred_region
      %s13 = ssub.s32 256, 256
      %14 = vsyncadd [#allocation6], %s13
      %s15 = sshll.u32 [#allocation5], 4
      %s16 = int_to_ptr.vmem [resolvable:$true] %s15
      %21 = dma.hbm_to_vmem [thread:$0]  %s0, 256, %s16, [#allocation6], 128, 128, 8
    $region5: #{tpu_custom_call.1} parent=1 // pred_fallthru
      _
    // Predicated region
    $region6: #{tpu_custom_call.1} parent=1 // pred_check
      _
    $region7: #{tpu_custom_call.1} parent=1 // pred_check_branch
      %23 = sbr.rel (0) target = $region9
    $region8: #{tpu_custom_call.1} parent=1 // pred_region
      %s25 = ssub.s32 256, 256
      %26 = vsyncadd [#allocation9], %s25
      %s27 = sshll.u32 [#allocation8], 4
      %s28 = int_to_ptr.vmem [resolvable:$true] %s27
      %33 = dma.hbm_to_vmem [thread:$0]  %s1, 256, %s28, [#allocation9], 128, 128, 8
    $region9: #{tpu_custom_call.1} parent=1 // pred_fallthru
      _
    // Predicated region
    $region10: #{tpu_custom_call.1} parent=1 // pred_check
      _
    $region11: #{tpu_custom_call.1} parent=1 // pred_check_branch
      %35 = sbr.rel (0) target = $region13
    $region12: #{tpu_custom_call.1} parent=1 // pred_region
      %36 = dma.done [#allocation6], 256
    $region13: #{tpu_custom_call.1} parent=1 // pred_fallthru
      _
    // Predicated region
    $region14: #{tpu_custom_call.1} parent=1 // pred_check
      _
    $region15: #{tpu_custom_call.1} parent=1 // pred_check_branch
      %38 = sbr.rel (0) target = $region17
    $region16: #{tpu_custom_call.1} parent=1 // pred_region
      %39 = dma.done [#allocation9], 256
    $region17: #{tpu_custom_call.1} parent=1 // pred_fallthru
      _
    %p40 = scmp.eq.s32.totalorder 0, 0
    // Predicated region
    $region18: #{tpu_custom_call.1} parent=1 // pred_check
      %p41 = pneg %p40
    $region19: #{tpu_custom_call.1} parent=1 // pred_check_branch
      %43 = sbr.rel (%p41) target = $region21
    $region20: #{tpu_custom_call.1} parent=1 // pred_region
      %44 = vst [vmem:[#allocation2] sm:$0xff] 0.0
      %45 = vst [vmem:[#allocation2 + $0x8] sm:$0xff] 0.0
      %46 = vst [vmem:[#allocation3] sm:$0xff] 0.0
      %47 = vst [vmem:[#allocation3 + $0x8] sm:$0xff] 0.0
      %48 = vst [vmem:[#allocation4] sm:$0xff] 0.0
      %49 = vst [vmem:[#allocation4 + $0x8] sm:$0xff] 0.0
    $region21: #{tpu_custom_call.1} parent=1 // pred_fallthru
      _
    %v50 = vlaneseq
    %v51 = vshrl.u32 %v50, 7
    %v52 = vadd.s32 %v51, 8
    %s53 = smul.u32 0, 16
    %v54 = vstv %s53
    %v55 = vadd.s32 %v54, %v51
    %v56 = vadd.s32 %v54, %v52
    %vm57 = vcmp.lt.s32.totalorder %v55, 16
    %vm58 = vcmp.lt.s32.totalorder %v56, 16
    %v59 = vld [vmem:[#allocation5] sm:$0xff]
    %v60 = vld [vmem:[#allocation5 + $0x8] sm:$0xff]
    %v61 = vld [vmem:[#allocation8] sm:$0xff]
    %v62 = vld [vmem:[#allocation8 + $0x8] sm:$0xff]
    %vm63 = vcmp.gt.f32.partialorder %v59, 0.5
    %vm64 = vcmp.gt.f32.partialorder %v60, 0.5
    %vm65 = vmand %vm57, %vm63
    %vm66 = vmand %vm58, %vm64
    %v67 = vsel %vm65, 1.0, 0.0
    %v68 = vsel %vm66, 1.0, 0.0
    %v69 = vsel %vm57, %v61, 0
    %v70 = vsel %vm58, %v62, 0
    %v71 = vcvt.s32.f32 %v69
    %v72 = vcvt.s32.f32 %v70
    %v73 = vmul.f32 %v67, %v71
    %v74 = vmul.f32 %v68, %v72
    %v75 = vld [vmem:[#allocation2] sm:$0xff]
    %v76 = vld [vmem:[#allocation2 + $0x8] sm:$0xff]
    %v77 = vadd.f32 %v75, %v73
    %v78 = vadd.f32 %v76, %v74
    %79 = vst [vmem:[#allocation2] sm:$0xff] %v77
    %80 = vst [vmem:[#allocation2 + $0x8] sm:$0xff] %v78
    %v81 = vld [vmem:[#allocation3] sm:$0xff]
    %v82 = vld [vmem:[#allocation3 + $0x8] sm:$0xff]
    %v83 = vadd.f32 %v81, %v67
    %v84 = vadd.f32 %v82, %v68
    %85 = vst [vmem:[#allocation3] sm:$0xff] %v83
    %86 = vst [vmem:[#allocation3 + $0x8] sm:$0xff] %v84
    %v87 = vld [vmem:[#allocation4] sm:$0xff]
    %v88 = vld [vmem:[#allocation4 + $0x8] sm:$0xff]
    %v89 = vadd.f32 %v87, %v71
    %v90 = vadd.f32 %v88, %v72
    %91 = vst [vmem:[#allocation4] sm:$0xff] %v89
    %92 = vst [vmem:[#allocation4 + $0x8] sm:$0xff] %v90
    // Predicated region
    $region22: #{tpu_custom_call.1} parent=1 // pred_check
      %p93 = pneg %p40
    $region23: #{tpu_custom_call.1} parent=1 // pred_check_branch
      %95 = sbr.rel (%p93) target = $region25
    $region24: #{tpu_custom_call.1} parent=1 // pred_region
      %v96 = vld [vmem:[#allocation2] sm:$0xff]
      %v97 = vld [vmem:[#allocation2 + $0x8] sm:$0xff]
      %v98 = vadd.f32 %v96, %v97
      %99 = vadd.xlane.f32.xlu0 %v98
      %v100 = vpop.xlane.xlu0 %99
      %v101 = vrot.slane %v100, 4
      %v102 = vadd.f32 %v100, %v101
      %v103 = vrot.slane %v102, 2
      %v104 = vadd.f32 %v102, %v103
      %v105 = vrot.slane %v104, 1
      %v106 = vadd.f32 %v104, %v105
      %s107 = vtos %v106
      %s108 = scalar_lea.smem [#allocation10], 0
      %109 = sst [smem:[%s108]] %s107
      %v110 = vld [vmem:[#allocation3] sm:$0xff]
      %v111 = vld [vmem:[#allocation3 + $0x8] sm:$0xff]
      %v112 = vadd.f32 %v110, %v111
      %113 = vadd.xlane.f32.xlu0 %v112
      %v114 = vpop.xlane.xlu0 %113
      %v115 = vrot.slane %v114, 4
      %v116 = vadd.f32 %v114, %v115
      %v117 = vrot.slane %v116, 2
      %v118 = vadd.f32 %v116, %v117
      %v119 = vrot.slane %v118, 1
      %v120 = vadd.f32 %v118, %v119
      %s121 = vtos %v120
      %s122 = scalar_lea.smem [#allocation10], 1
      %123 = sst [smem:[%s122]] %s121
      %v124 = vld [vmem:[#allocation4] sm:$0xff]
      %v125 = vld [vmem:[#allocation4 + $0x8] sm:$0xff]
      %v126 = vadd.f32 %v124, %v125
      %127 = vadd.xlane.f32.xlu0 %v126
      %v128 = vpop.xlane.xlu0 %127
      %v129 = vrot.slane %v128, 4
      %v130 = vadd.f32 %v128, %v129
      %v131 = vrot.slane %v130, 2
      %v132 = vadd.f32 %v130, %v131
      %v133 = vrot.slane %v132, 1
      %v134 = vadd.f32 %v132, %v133
      %s135 = vtos %v134
      %s136 = scalar_lea.smem [#allocation10], 2
      %137 = sst [smem:[%s136]] %s135
    $region25: #{tpu_custom_call.1} parent=1 // pred_fallthru
      _
    // Predicated region
    $region26: #{tpu_custom_call.1} parent=1 // pred_check
      _
    $region27: #{tpu_custom_call.1} parent=1 // pred_check_branch
      %139 = sbr.rel (0) target = $region29
    $region28: #{tpu_custom_call.1} parent=1 // pred_region
      %s141 = ssub.s32 16, 16
      %142 = vsyncadd [#allocation7], %s141
      %145 = dma.smem_to_hbm [#allocation10], 16, %s2, [#allocation7]
    $region29: #{tpu_custom_call.1} parent=1 // pred_fallthru
      _
    // Predicated region
    $region30: #{tpu_custom_call.1} parent=1 // pred_check
      _
    $region31: #{tpu_custom_call.1} parent=1 // pred_check_branch
      %147 = sbr.rel (0) target = $region33
    $region32: #{tpu_custom_call.1} parent=1 // pred_region
      %148 = dma.done [#allocation7], 16
    $region33: #{tpu_custom_call.1} parent=1 // pred_fallthru
      _
    %149 = sfence
    %150 = vsyncpa [#allocation6], 1
    %151 = vsyncpa [#allocation9], 1
    %152 = vsyncpa [#allocation7], 1

</llo_original>
